<compile_context>
chip_gen: v7x
topology: tpu7x:2x2x1
jax: 0.10.0
libtpu: 0.0.40
codegen_flags: <defaults>
</compile_context>

<pallas_src>
import jax
import jax.numpy as jnp
from jax.experimental import pallas as pl
from jax.experimental.pallas import tpu as pltpu

HIDDEN = 16  # conv_in out_channels / conv_out in_channels


def mose_kernel(x_ref, params_ref, y_ref):
    # x_ref:      (BT, C, HW) VMEM block (BT batch rows per grid step)
    # params_ref: (3, 1, HIDDEN) VMEM, rows = [w1, b1, w2]
    x = x_ref[...]
    xf = x.astype(jnp.float32)                         # squeeze path always in f32

    # AdaptiveAvgPool2d(1): mean over the flattened spatial (lane) axis.
    m = jnp.mean(xf, axis=-1, keepdims=True)           # (BT, C, 1)

    w1 = params_ref[0:1]                               # (1, 1, HIDDEN)
    b1 = params_ref[1:2]
    w2 = params_ref[2:3]

    # Conv2d(1,16,1) + ReLU on the permuted tensor.
    h = jnp.maximum(m * w1 + b1, 0.0)                  # (BT, C, HIDDEN)

    # Conv2d(16,1,1).  conv_out bias b2 is a per-row constant under the
    # channel softmax below, i.e. mathematically a no-op -> omitted.
    s = jnp.sum(h * w2, axis=-1, keepdims=True)        # (BT, C, 1)

    # softmax over the channel (sublane) axis, independently per batch row.
    s_max = jnp.max(s, axis=1, keepdims=True)          # (BT, 1, 1)
    e = jnp.exp(s - s_max)
    g = e * pl.reciprocal(jnp.sum(e, axis=1, keepdims=True), approx=True)

    # gate the input (lane-broadcast of g over HW).
    y_ref[...] = (xf * g).astype(y_ref.dtype)


def _vmem_budget():
    """Generation-aware (physical_vmem, two_tensorcores, vmem_cap, target_block_bytes)."""
    phys = None
    try:
        info = pltpu.get_tpu_info()
        phys = int(getattr(info, "vmem_capacity_bytes", 0)) or None
    except Exception:
        phys = None
    if phys is None:
        # Unknown hardware: conservative caps that are safe on every
        # generation; no megacore grid shaping we can't confirm is needed.
        return 64 << 20, False, 32 << 20, 6 << 20
    if phys <= (96 << 20):
        # v7x-class: 64 MiB VMEM per TensorCore, 2 TCs per chip.
        return phys, True, 36 << 20, 6 << 20
    # v5e / v6e: 128 MiB VMEM, single TensorCore.
    return phys, False, 64 << 20, 12 << 20


def _plan_tiles(B, per_batch_bytes, max_batch_tile=None):
    """Pick the batch tile (rows per grid step) and the vmem limit to request."""
    phys, two_tc, vmem_cap, target_block = _vmem_budget()
    slack = 2 << 20  # params + pipelining bookkeeping headroom

    # Largest batch tile whose block hits the per-generation byte target.
    bt = max(1, min(B, target_block // max(per_batch_bytes, 1)))
    if max_batch_tile is not None:
        bt = max(1, min(bt, int(max_batch_tile)))

    if two_tc and B >= 4:
        # v7x megacore: give each TensorCore >= 2 blocks; prefer an even block
        # count so the "parallel" axis load-balances across the 2 TCs.
        bt = max(1, min(bt, B // 4))
        while bt > 1 and pl.cdiv(B, bt) % 2 != 0:
            bt -= 1
    elif two_tc and B >= 2:
        bt = max(1, min(bt, B // 2))
    # Single-TC chips (v5e/v6e): no forced grid split -- block size is driven
    # purely by the VMEM target (bigger DMAs on a bandwidth-bound kernel).

    def need(b):
        # double-buffered input block + double-buffered output block + slack
        return 4 * b * per_batch_bytes + slack

    # Never clamp the vmem limit below the real requirement: shrink bt instead.
    while bt > 1 and need(bt) > vmem_cap:
        bt -= 1

    vmem_limit = max(need(bt), 16 << 20)
    if vmem_limit > vmem_cap:
        # A single (1, C, HW) slab already exceeds the per-generation budget:
        # request what the block actually needs (up to ~physical VMEM) rather
        # than silently under-provisioning.
        # TODO(synk): if even one slab exceeds physical VMEM, restructure as a
        # two-pass kernel (tiled spatial-mean accumulation, then gating) so HW
        # itself can be tiled.
        vmem_limit = min(vmem_limit, phys - (4 << 20))
    else:
        vmem_limit = min(vmem_limit, vmem_cap)
    return bt, int(vmem_limit)


def mose_forward(x_nchw, w1, b1, w2, b2=None, *, donate_x=False, max_batch_tile=None):
    """MoSE forward.  x_nchw: (B, C, H, W) (f32 or bf16).  Returns same shape/dtype.

    b2 (conv_out bias) is accepted for API fidelity but is a per-row constant
    under the channel softmax, i.e. mathematically a no-op, so it is unused.
    """
    del b2
    B, C, H, W = x_nchw.shape
    HW = H * W
    # Channels on sublanes, flattened spatial on the lane axis.  When HW is not
    # a multiple of 128 the output stores are masked (vst.msk); we deliberately
    # do NOT pad HW in the wrapper: a pad + slice would add two extra full HBM
    # passes, which costs more than masked stores on this bandwidth-bound kernel.
    x = x_nchw.reshape(B, C, HW)

    itemsize = jnp.dtype(x.dtype).itemsize
    per_batch_bytes = C * HW * itemsize
    bt, vmem_limit = _plan_tiles(B, per_batch_bytes, max_batch_tile)
    n_blocks = pl.cdiv(B, bt)  # ragged last block is fine: reductions are per batch row

    # Pack the three per-hidden-unit parameter vectors into one VMEM tile.
    params = jnp.stack([jnp.asarray(w1), jnp.asarray(b1), jnp.asarray(w2)])
    params = params.reshape(3, 1, HIDDEN).astype(jnp.float32)

    y = pl.pallas_call(
        mose_kernel,
        out_shape=jax.ShapeDtypeStruct((B, C, HW), x.dtype),
        grid_spec=pltpu.PrefetchScalarGridSpec(
            num_scalar_prefetch=0,
            grid=(n_blocks,),
            in_specs=[
                pl.BlockSpec((bt, C, HW), lambda i: (i, 0, 0)),
                pl.BlockSpec((3, 1, HIDDEN), lambda i: (0, 0, 0)),
            ],
            out_specs=pl.BlockSpec((bt, C, HW), lambda i: (i, 0, 0)),
        ),
        compiler_params=pltpu.CompilerParams(
            dimension_semantics=("parallel",),
            vmem_limit_bytes=vmem_limit),
        input_output_aliases=({0: 0} if donate_x else {}),
    )(x, params)

    return y.reshape(B, C, H, W)


def mose_reference(x, w1, b1, w2, b2):
    """Pure-JAX reference mirroring the PyTorch forward."""
    xf = x.astype(jnp.float32)
    m = jnp.mean(xf, axis=(2, 3))                                            # (B, C)
    h = jax.nn.relu(m[:, :, None] * w1[None, None, :] + b1[None, None, :])   # (B, C, 16)
    s = jnp.sum(h * w2[None, None, :], axis=-1) + b2                         # (B, C)
    g = jax.nn.softmax(s, axis=1)                                            # (B, C)
    return (xf * g[:, :, None, None]).astype(x.dtype)


if __name__ == "__main__":
    key = jax.random.PRNGKey(0)
    kx, k1, k2, k3, k4, kx2 = jax.random.split(key, 6)

    # Primary check: shapes consistent with the module's intended use.
    B, C, H, W = 2, 4, 16, 16
    x = jax.random.normal(kx, (B, C, H, W), dtype=jnp.float32)

    # Deterministic synthetic parameters (Conv2d(1,16,1) and Conv2d(16,1,1)).
    w1 = jax.random.normal(k1, (HIDDEN,), dtype=jnp.float32) * 0.5   # conv_in weight (16,1,1,1)
    b1 = jax.random.normal(k2, (HIDDEN,), dtype=jnp.float32) * 0.1   # conv_in bias
    w2 = jax.random.normal(k3, (HIDDEN,), dtype=jnp.float32) * 0.5   # conv_out weight (1,16,1,1)
    b2 = jax.random.normal(k4, (), dtype=jnp.float32) * 0.1          # conv_out bias (softmax no-op)

    y = mose_forward(x, w1, b1, w2, b2)
    jax.block_until_ready(y)
    y_ref = mose_reference(x, w1, b1, w2, b2)
    assert y.shape == (B, C, H, W)
    assert jnp.max(jnp.abs(y - y_ref)) < 5e-3, "mismatch vs pure-JAX reference"

    # Secondary check: ragged batch tiles (cdiv grid), non-multiple-of-8
    # channel count, non-lane-dense HW (masked stores), in-place gating alias.
    B2, C2, H2, W2 = 3, 5, 7, 7
    x2 = jax.random.normal(kx2, (B2, C2, H2, W2), dtype=jnp.float32)
    y2_ref = mose_reference(x2, w1, b1, w2, b2)
    y2 = mose_forward(x2, w1, b1, w2, b2, donate_x=True, max_batch_tile=2)
    jax.block_until_ready(y2)
    assert y2.shape == (B2, C2, H2, W2)
    assert jnp.max(jnp.abs(y2 - y2_ref)) < 5e-3, "mismatch on ragged/masked case"

    print("KERNEL_OK")
</pallas_src>

<mosaic_0001>
module attributes {stable_mosaic.version = 11 : i64} {
  func.func @mose_kernel(%arg0: i32, %arg1: memref<2x4x256xf32, #tpu.memory_space<vmem>>, %arg2: memref<3x1x16xf32, #tpu.memory_space<vmem>>, %arg3: memref<2x4x256xf32, #tpu.memory_space<vmem>>) attributes {dimension_semantics = [#tpu.dimension_semantics<parallel>], iteration_bounds = array<i64: 1>, scalar_prefetch = 0 : i64, scratch_operands = 0 : i64, tpu.core_type = #tpu.core_type<tc>, window_params = [{transform_indices = @transform_0, window_bounds = array<i64: 2, 4, 256>}, {pipeline_mode = #tpu.pipeline_mode<synchronous>, transform_indices = @transform_1, window_bounds = array<i64: 3, 1, 16>}, {transform_indices = @transform_2, window_bounds = array<i64: 2, 4, 256>}]} {
    %c0 = arith.constant 0 : index
    %c0_0 = arith.constant 0 : index
    %c0_1 = arith.constant 0 : index
    %0 = vector.load %arg1[%c0, %c0_0, %c0_1] : memref<2x4x256xf32, #tpu.memory_space<vmem>>, vector<2x4x256xf32>
    %cst = arith.constant dense<0.000000e+00> : vector<2x4xf32>
    %1 = vector.multi_reduction <add>, %0, %cst [2] : vector<2x4x256xf32> to vector<2x4xf32>
    %2 = vector.shape_cast %1 : vector<2x4xf32> to vector<2x4x1xf32>
    %cst_2 = arith.constant 2.560000e+02 : f32
    %3 = vector.broadcast %cst_2 : f32 to vector<2x4x1xf32>
    %4 = arith.divf %2, %3 : vector<2x4x1xf32>
    %c0_3 = arith.constant 0 : index
    %c0_4 = arith.constant 0 : index
    %c0_5 = arith.constant 0 : index
    %5 = vector.load %arg2[%c0_3, %c0_4, %c0_5] : memref<3x1x16xf32, #tpu.memory_space<vmem>>, vector<1x1x16xf32>
    %c1 = arith.constant 1 : index
    %c0_6 = arith.constant 0 : index
    %c0_7 = arith.constant 0 : index
    %6 = vector.load %arg2[%c1, %c0_6, %c0_7] : memref<3x1x16xf32, #tpu.memory_space<vmem>>, vector<1x1x16xf32>
    %c2 = arith.constant 2 : index
    %c0_8 = arith.constant 0 : index
    %c0_9 = arith.constant 0 : index
    %7 = vector.load %arg2[%c2, %c0_8, %c0_9] : memref<3x1x16xf32, #tpu.memory_space<vmem>>, vector<1x1x16xf32>
    %8 = vector.broadcast %4 : vector<2x4x1xf32> to vector<2x4x16xf32>
    %9 = vector.broadcast %5 : vector<1x1x16xf32> to vector<2x4x16xf32>
    %10 = arith.mulf %8, %9 : vector<2x4x16xf32>
    %11 = vector.broadcast %6 : vector<1x1x16xf32> to vector<2x4x16xf32>
    %12 = arith.addf %10, %11 : vector<2x4x16xf32>
    %cst_10 = arith.constant 0.000000e+00 : f32
    %13 = vector.broadcast %cst_10 : f32 to vector<2x4x16xf32>
    %14 = arith.maximumf %12, %13 : vector<2x4x16xf32>
    %15 = vector.broadcast %7 : vector<1x1x16xf32> to vector<2x4x16xf32>
    %16 = arith.mulf %14, %15 : vector<2x4x16xf32>
    %cst_11 = arith.constant dense<0.000000e+00> : vector<2x4xf32>
    %17 = vector.multi_reduction <add>, %16, %cst_11 [2] : vector<2x4x16xf32> to vector<2x4xf32>
    %18 = vector.shape_cast %17 : vector<2x4xf32> to vector<2x4x1xf32>
    %cst_12 = arith.constant dense<0xFF800000> : vector<2x1xf32>
    %19 = vector.multi_reduction <maximumf>, %18, %cst_12 [1] : vector<2x4x1xf32> to vector<2x1xf32>
    %20 = vector.shape_cast %19 : vector<2x1xf32> to vector<2x1x1xf32>
    %21 = vector.broadcast %20 : vector<2x1x1xf32> to vector<2x4x1xf32>
    %22 = arith.subf %18, %21 : vector<2x4x1xf32>
    %23 = math.exp %22 : vector<2x4x1xf32>
    %cst_13 = arith.constant dense<0.000000e+00> : vector<2x1xf32>
    %24 = vector.multi_reduction <add>, %23, %cst_13 [1] : vector<2x4x1xf32> to vector<2x1xf32>
    %25 = vector.shape_cast %24 : vector<2x1xf32> to vector<2x1x1xf32>
    %26 = tpu.reciprocal %25 {approx = true} : vector<2x1x1xf32> -> vector<2x1x1xf32>
    %27 = vector.broadcast %26 : vector<2x1x1xf32> to vector<2x4x1xf32>
    %28 = arith.mulf %23, %27 : vector<2x4x1xf32>
    %29 = vector.broadcast %28 : vector<2x4x1xf32> to vector<2x4x256xf32>
    %30 = arith.mulf %0, %29 : vector<2x4x256xf32>
    %c0_14 = arith.constant 0 : index
    %c0_15 = arith.constant 0 : index
    %c0_16 = arith.constant 0 : index
    %31 = vector.load %arg3[%c0_14, %c0_15, %c0_16] : memref<2x4x256xf32, #tpu.memory_space<vmem>>, vector<2x4x256xf32>
    tpu.vector_store %arg3[%c0_14, %c0_15, %c0_16], %30 {strides = array<i32>} : memref<2x4x256xf32, #tpu.memory_space<vmem>>, vector<2x4x256xf32>,
    return
  }
  func.func @transform_0(%arg0: i32) -> (i32, i32, i32) {
    %c0_i32 = arith.constant 0 : i32
    %c0_i32_0 = arith.constant 0 : i32
    %c0_i32_1 = arith.constant 0 : i32
    return %arg0, %c0_i32, %c0_i32_0 : i32, i32, i32
  }
  func.func @transform_1(%arg0: i32) -> (i32, i32, i32) {
    %c0_i32 = arith.constant 0 : i32
    %c0_i32_0 = arith.constant 0 : i32
    %c0_i32_1 = arith.constant 0 : i32
    %c0_i32_2 = arith.constant 0 : i32
    return %c0_i32, %c0_i32_0, %c0_i32_1 : i32, i32, i32
  }
  func.func @transform_2(%arg0: i32) -> (i32, i32, i32) {
    %c0_i32 = arith.constant 0 : i32
    %c0_i32_0 = arith.constant 0 : i32
    %c0_i32_1 = arith.constant 0 : i32
    return %arg0, %c0_i32, %c0_i32_0 : i32, i32, i32
  }
}

</mosaic_0001>

<llo_original>
// kernel: tpu_custom_call.1
$region0: #{tpu_custom_call.1}
  #allocation0 [shape = 'u32[]', space=smem, size = 0x4, offset = 0x4, fixed_abs, tag = 'smem constant byte address 0x4 - core index']
  #allocation1 [shape = 'u32[144,128]{1,0:T(1,128)}', space=vmem, size = 0x12000, scoped, tag = 'internal scratch']
  %s0 = inlined_call_operand.hbm [shape: f32[2,4,256], index: 0, kind: input, shape index: {}]
  %s1 = inlined_call_operand.vmem [shape: f32[3,1,16], index: 1, kind: input, shape index: {}]
  %s2 = inlined_call_operand.hbm [shape: f32[2,4,256], index: 2, kind: output, shape index: {}]
  %s3 = sld [smem:[#allocation0]]
  $region22: #{tpu_custom_call.1} parent=0
    _
  %s5 = ssub.s32 1, %s3
  %s6 = scalar_select 0, %s5, %s3
  $region1: #{tpu_custom_call.1} parent=0
    #allocation2 [shape = 'u8[8192]{0}', space=vmem, size = 0x2000, scoped, tag = 'input window, operand 0, single buffered']
    #allocation3 [shape = 's32[1]{0}', space=sflag, size = 0x4, scoped, tag = 'scoped memory for tpu_custom_call.1']
    #allocation4 [shape = 's32[1]{0}', space=sflag, size = 0x4, scoped, tag = 'scoped memory for tpu_custom_call.1']
    #allocation5 [shape = 'u8[8192]{0}', space=vmem, size = 0x2000, scoped, tag = 'output window, operand 0, single buffered']
    %7 = vsyncpa [#allocation3], 0
    %8 = vsyncpa [#allocation4], 0
    // Predicated region
    $region2: #{tpu_custom_call.1} parent=1 // pred_check
      _
    $region3: #{tpu_custom_call.1} parent=1 // pred_check_branch
      %10 = sbr.rel (0) target = $region5
    $region4: #{tpu_custom_call.1} parent=1 // pred_region
      %s12 = ssub.s32 256, 256
      %13 = vsyncadd [#allocation3], %s12
      %s14 = sshll.u32 [#allocation2], 4
      %s15 = int_to_ptr.vmem [resolvable:$true] %s14
      %20 = dma.hbm_to_vmem [thread:$0]  %s0, 256, %s15, [#allocation3], 128, 128, 8
    $region5: #{tpu_custom_call.1} parent=1 // pred_fallthru
      _
    // Predicated region
    $region6: #{tpu_custom_call.1} parent=1 // pred_check
      _
    $region7: #{tpu_custom_call.1} parent=1 // pred_check_branch
      %22 = sbr.rel (0) target = $region9
    $region8: #{tpu_custom_call.1} parent=1 // pred_region
      _
    $region9: #{tpu_custom_call.1} parent=1 // pred_fallthru
      _
    // Predicated region
    $region10: #{tpu_custom_call.1} parent=1 // pred_check
      _
    $region11: #{tpu_custom_call.1} parent=1 // pred_check_branch
      %24 = sbr.rel (0) target = $region13
    $region12: #{tpu_custom_call.1} parent=1 // pred_region
      %25 = dma.done [#allocation3], 256
    $region13: #{tpu_custom_call.1} parent=1 // pred_fallthru
      _
    %v26 = vld [vmem:[#allocation2] sm:$0xff]
    %v27 = vld [vmem:[#allocation2 + $0x8] sm:$0xff]
    %v30 = vcombine.high %v26, %v26
    %v31 = vcombine.high %v27, %v27
    %vm34 = vcmask 1043456
    %v35 = vsel %vm34, %v26, 0.0
    %v36 = vsel %vm34, %v30, 0.0
    %v37 = vadd.f32 %v35, %v36
    %38 = vadd.xlane.f32.xlu0 %v37
    %v39 = vpop.xlane.xlu0 %38
    %v40 = vsel %vm34, %v27, 0.0
    %v41 = vsel %vm34, %v31, 0.0
    %v42 = vadd.f32 %v40, %v41
    %43 = vadd.xlane.f32.xlu0 %v42
    %v44 = vpop.xlane.xlu0 %43
    %v45 = vrcp.pop 256.0
    %v46 = vmul.f32 %v39, %v45
    %v47 = vmul.f32 %v44, %v45
    %v48 = vld [vmem:[%s1] sm:$0x1]
    %s49 = scalar_lea.vmem %s1, 1
    %v50 = vld [vmem:[%s49] sm:$0x1]
    %s51 = scalar_lea.vmem %s1, 2
    %v52 = vld [vmem:[%s51] sm:$0x1]
    %v54 = vlaneseq
    %v55 = vshrl.u32 %v54, 7
    %v56 = vsub.s32 0, %v55
    %v57 = vrot.slane %v48, %v56
    %v59 = vmul.f32 %v46, %v57
    %v60 = vmul.f32 %v47, %v57
    %v62 = vlaneseq
    %v63 = vshrl.u32 %v62, 7
    %v64 = vsub.s32 0, %v63
    %v65 = vrot.slane %v50, %v64
    %v67 = vadd.f32 %v59, %v65
    %v68 = vadd.f32 %v60, %v65
    %v69 = vmax.f32 %v67, 0.0
    %v70 = vmax.f32 %v68, 0.0
    %v72 = vlaneseq
    %v73 = vshrl.u32 %v72, 7
    %v74 = vsub.s32 0, %v73
    %v75 = vrot.slane %v52, %v74
    %v77 = vmul.f32 %v69, %v75
    %v78 = vmul.f32 %v70, %v75
    %vm79 = vcmask 125952
    %v80 = vsel %vm79, %v77, 0.0
    %81 = vadd.xlane.f32.xlu0 %v80
    %v82 = vpop.xlane.xlu0 %81
    %v83 = vsel %vm79, %v78, 0.0
    %84 = vadd.xlane.f32.xlu0 %v83
    %v85 = vpop.xlane.xlu0 %84
    %v86 = vsel %vm34, %v82, -inf
    %v87 = vrot.slane %v86, 4
    %v88 = vmax.f32 %v86, %v87
    %v89 = vrot.slane %v88, 2
    %v90 = vmax.f32 %v88, %v89
    %v91 = vrot.slane %v90, 1
    %v92 = vmax.f32 %v90, %v91
    %v93 = vsel %vm34, %v85, -inf
    %v94 = vrot.slane %v93, 4
    %v95 = vmax.f32 %v93, %v94
    %v96 = vrot.slane %v95, 2
    %v97 = vmax.f32 %v95, %v96
    %v98 = vrot.slane %v97, 1
    %v99 = vmax.f32 %v97, %v98
    %v100 = vsub.f32 %v82, %v92
    %v101 = vsub.f32 %v85, %v99
    %v102 = vmul.f32 %v100, 1.442695
    %v103 = vpow.pop %v102
    %v104 = vmul.f32 %v101, 1.442695
    %v105 = vpow.pop %v104
    %v106 = vsel %vm34, %v103, 0.0
    %v107 = vrot.slane %v106, 4
    %v108 = vadd.f32 %v106, %v107
    %v109 = vrot.slane %v108, 2
    %v110 = vadd.f32 %v108, %v109
    %v111 = vrot.slane %v110, 1
    %v112 = vadd.f32 %v110, %v111
    %v113 = vsel %vm34, %v105, 0.0
    %v114 = vrot.slane %v113, 4
    %v115 = vadd.f32 %v113, %v114
    %v116 = vrot.slane %v115, 2
    %v117 = vadd.f32 %v115, %v116
    %v118 = vrot.slane %v117, 1
    %v119 = vadd.f32 %v117, %v118
    %v120 = vrcp.pop %v112
    %v121 = vrcp.pop %v119
    %v122 = vmul.f32 %v103, %v120
    %v123 = vmul.f32 %v105, %v121
    %v127 = vunpack.c.l.s4 839922192
    %v128 = vunpack.c.0.s8 %v127
    %v129 = vlaneseq
    %v130 = vshrl.u32 %v129, 7
    %v131 = vsub.s32 %v128, %v130
    %v132 = vrot.slane %v122, %v131
    %v134 = vunpack.c.l.s4 839922192
    %v135 = vunpack.c.0.s8 %v134
    %v136 = vlaneseq
    %v137 = vshrl.u32 %v136, 7
    %v138 = vsub.s32 %v135, %v137
    %v139 = vrot.slane %v123, %v138
    %v142 = vmul.f32 %v26, %v132
    %v143 = vmul.f32 %v27, %v139
    %144 = vst [vmem:[#allocation5] sm:$0xff] %v142
    %145 = vst [vmem:[#allocation5 + $0x8] sm:$0xff] %v143
    // Predicated region
    $region14: #{tpu_custom_call.1} parent=1 // pred_check
      _
    $region15: #{tpu_custom_call.1} parent=1 // pred_check_branch
      %147 = sbr.rel (0) target = $region17
    $region16: #{tpu_custom_call.1} parent=1 // pred_region
      %s149 = ssub.s32 256, 256
      %150 = vsyncadd [#allocation4], %s149
      %s151 = sshll.u32 [#allocation5], 4
      %s152 = int_to_ptr.vmem [resolvable:$true] %s151
      %157 = dma.vmem_to_hbm [thread:$0]  %s152, 256, %s2, [#allocation4], 128, 128, 8
    $region17: #{tpu_custom_call.1} parent=1 // pred_fallthru
      _
    // Predicated region
    $region18: #{tpu_custom_call.1} parent=1 // pred_check
      _
    $region19: #{tpu_custom_call.1} parent=1 // pred_check_branch
      %159 = sbr.rel (0) target = $region21
    $region20: #{tpu_custom_call.1} parent=1 // pred_region
      %160 = dma.done [#allocation4], 256
    $region21: #{tpu_custom_call.1} parent=1 // pred_fallthru
      _
    %161 = vsyncpa [#allocation3], 1
    %162 = vsyncpa [#allocation4], 1

</llo_original>
